<compile_context>
chip_gen: v5e
topology: v5e:2x2
jax: 0.10.0
libtpu: 0.0.40
codegen_flags: <defaults>
</compile_context>

<pallas_src>
import jax
import jax.numpy as jnp
from jax.experimental import pallas as pl
from jax.experimental.pallas import tpu as pltpu


def _attention_kernel(x_ref, w_ref, o_ref):
    # x_ref: (Bblk, S, H) block of batch rows
    # w_ref: (1, H) projection weight (lane-dense, resident)
    # o_ref: (Bblk, S) softmax(scores) over the S (last/lane) axis
    x = x_ref[...].astype(jnp.float32)          # (Bblk, S, H)
    w = w_ref[...].astype(jnp.float32)          # (1, H)

    # VPU multiply + lane reduce over H -> lane-dense (Bblk, S) scores.
    scores = jnp.sum(x * w[None, :, :], axis=-1)            # (Bblk, S)

    # Numerically stable softmax over the sequence (last) axis.
    m = jnp.max(scores, axis=-1, keepdims=True)              # (Bblk, 1)
    e = jnp.exp(scores - m)                                   # (Bblk, S)
    denom = jnp.sum(e, axis=-1, keepdims=True)                # (Bblk, 1)
    probs = e * pl.reciprocal(denom, approx=False)            # (Bblk, S)

    o_ref[...] = probs.astype(o_ref.dtype)


def attention_forward(lstm_output, weight, *, tile_bytes=8 * 1024 * 1024):
    """lstm_output: (B, S, H); weight: (1, H) (PyTorch nn.Linear layout).

    Returns softmax(lstm_output @ weight.T, axis=-2) with shape (B, S, 1).
    """
    B, S, H = lstm_output.shape
    w = weight.astype(jnp.float32)                            # (1, H), lane-dense

    # Choose rows-per-grid-step from a VMEM byte budget (per input buffer).
    row_bytes = S * H * jnp.dtype(lstm_output.dtype).itemsize
    bblk = max(1, tile_bytes // max(row_bytes, 1))
    if bblk >= B:
        bblk = B                      # single block covers full batch
        b_pad = B
    else:
        # Sub-full blocks: keep sublane dim of the (Bblk, S) output a multiple
        # of 8 and pad the batch so it divides evenly.
        bblk = max(8, (bblk // 8) * 8)
        b_pad = ((B + bblk - 1) // bblk) * bblk

    x = lstm_output
    if b_pad != B:
        x = jnp.pad(x, ((0, b_pad - B), (0, 0), (0, 0)))

    out = pl.pallas_call(
        _attention_kernel,
        out_shape=jax.ShapeDtypeStruct((b_pad, S), jnp.float32),
        grid_spec=pltpu.PrefetchScalarGridSpec(
            num_scalar_prefetch=0,
            grid=(b_pad // bblk,),
            in_specs=[
                pl.BlockSpec((bblk, S, H), lambda b: (b, 0, 0)),
                pl.BlockSpec((1, H), lambda b: (0, 0)),
            ],
            out_specs=pl.BlockSpec((bblk, S), lambda b: (b, 0)),
        ),
        compiler_params=pltpu.CompilerParams(
            dimension_semantics=("parallel",),
            vmem_limit_bytes=48 * 1024 * 1024,
        ),
    )(x, w)

    # Lane-dense kernel output -> PyTorch-shaped (B, S, 1) outside the kernel.
    return out[:B, :, None]


def attention_reference(lstm_output, weight):
    # Pure-JAX reference matching PyTorch semantics exactly.
    scores = lstm_output @ weight.T                           # (B, S, 1)
    return jax.nn.softmax(scores, axis=-2)                    # softmax over seq axis


if __name__ == "__main__":
    B, S, H = 2, 8, 32  # batch, sequence length, hidden_dim

    key = jax.random.PRNGKey(0)
    kx, kw = jax.random.split(key)
    lstm_output = jax.random.normal(kx, (B, S, H), dtype=jnp.float32)
    # nn.Linear(hidden_dim, 1, bias=False) weight has shape (1, hidden_dim)
    weight = jax.random.normal(kw, (1, H), dtype=jnp.float32) * 0.1

    out = attention_forward(lstm_output, weight)
    out = jax.block_until_ready(out)

    ref = attention_reference(lstm_output, weight)
    assert out.shape == (B, S, 1), out.shape
    assert jnp.allclose(out, ref, atol=1e-5, rtol=1e-5), "mismatch vs reference"
    # per-batch softmax sums to 1 over the sequence axis
    assert jnp.allclose(jnp.sum(out, axis=-2), 1.0, atol=1e-5)

    print("KERNEL_OK")
</pallas_src>

<mosaic_0001>
module attributes {stable_mosaic.version = 11 : i64} {
  func.func @_attention_kernel(%arg0: i32, %arg1: memref<2x8x32xf32, #tpu.memory_space<vmem>>, %arg2: memref<1x32xf32, #tpu.memory_space<vmem>>, %arg3: memref<2x8xf32, #tpu.memory_space<vmem>>) attributes {dimension_semantics = [#tpu.dimension_semantics<parallel>], iteration_bounds = array<i64: 1>, scalar_prefetch = 0 : i64, scratch_operands = 0 : i64, tpu.core_type = #tpu.core_type<tc>, window_params = [{transform_indices = @transform_0, window_bounds = array<i64: 2, 8, 32>}, {pipeline_mode = #tpu.pipeline_mode<synchronous>, transform_indices = @transform_1, window_bounds = array<i64: 1, 32>}, {transform_indices = @transform_2, window_bounds = array<i64: 2, 8>}]} {
    %c0 = arith.constant 0 : index
    %c0_0 = arith.constant 0 : index
    %c0_1 = arith.constant 0 : index
    %0 = vector.load %arg1[%c0, %c0_0, %c0_1] : memref<2x8x32xf32, #tpu.memory_space<vmem>>, vector<2x8x32xf32>
    %c0_2 = arith.constant 0 : index
    %c0_3 = arith.constant 0 : index
    %1 = vector.load %arg2[%c0_2, %c0_3] : memref<1x32xf32, #tpu.memory_space<vmem>>, vector<1x32xf32>
    %2 = vector.shape_cast %1 : vector<1x32xf32> to vector<1x1x32xf32>
    %3 = vector.broadcast %2 : vector<1x1x32xf32> to vector<2x8x32xf32>
    %4 = arith.mulf %0, %3 : vector<2x8x32xf32>
    %cst = arith.constant dense<0.000000e+00> : vector<2x8xf32>
    %5 = vector.multi_reduction <add>, %4, %cst [2] : vector<2x8x32xf32> to vector<2x8xf32>
    %cst_4 = arith.constant dense<0xFF800000> : vector<2xf32>
    %6 = vector.multi_reduction <maximumf>, %5, %cst_4 [1] : vector<2x8xf32> to vector<2xf32>
    %7 = vector.shape_cast %6 : vector<2xf32> to vector<2x1xf32>
    %8 = vector.broadcast %7 : vector<2x1xf32> to vector<2x8xf32>
    %9 = arith.subf %5, %8 : vector<2x8xf32>
    %10 = math.exp %9 : vector<2x8xf32>
    %cst_5 = arith.constant dense<0.000000e+00> : vector<2xf32>
    %11 = vector.multi_reduction <add>, %10, %cst_5 [1] : vector<2x8xf32> to vector<2xf32>
    %12 = vector.shape_cast %11 : vector<2xf32> to vector<2x1xf32>
    %13 = tpu.reciprocal %12 : vector<2x1xf32> -> vector<2x1xf32>
    %14 = vector.broadcast %13 : vector<2x1xf32> to vector<2x8xf32>
    %15 = arith.mulf %10, %14 : vector<2x8xf32>
    %c0_6 = arith.constant 0 : index
    %c0_7 = arith.constant 0 : index
    %16 = vector.load %arg3[%c0_6, %c0_7] : memref<2x8xf32, #tpu.memory_space<vmem>>, vector<2x8xf32>
    tpu.vector_store %arg3[%c0_6, %c0_7], %15 {strides = array<i32>} : memref<2x8xf32, #tpu.memory_space<vmem>>, vector<2x8xf32>,
    return
  }
  func.func @transform_0(%arg0: i32) -> (i32, i32, i32) {
    %c0_i32 = arith.constant 0 : i32
    %c0_i32_0 = arith.constant 0 : i32
    %c0_i32_1 = arith.constant 0 : i32
    return %arg0, %c0_i32, %c0_i32_0 : i32, i32, i32
  }
  func.func @transform_1(%arg0: i32) -> (i32, i32) {
    %c0_i32 = arith.constant 0 : i32
    %c0_i32_0 = arith.constant 0 : i32
    %c0_i32_1 = arith.constant 0 : i32
    return %c0_i32, %c0_i32_0 : i32, i32
  }
  func.func @transform_2(%arg0: i32) -> (i32, i32) {
    %c0_i32 = arith.constant 0 : i32
    %c0_i32_0 = arith.constant 0 : i32
    return %arg0, %c0_i32 : i32, i32
  }
}

</mosaic_0001>

<llo_original>
// kernel: tpu_custom_call.1
$region0: #{tpu_custom_call.1}
  #allocation0 [shape = 'u32[]', space=smem, size = 0x4, offset = 0x4, fixed_abs, tag = 'smem constant byte address 0x4 - core index']
  #allocation1 [shape = 'u32[72,128]{1,0:T(1,128)}', space=vmem, size = 0x9000, scoped, tag = 'internal scratch']
  %s0 = inlined_call_operand.hbm [shape: f32[2,8,32], index: 0, kind: input, shape index: {}]
  %s1 = inlined_call_operand.hbm [shape: f32[1,32], index: 1, kind: input, shape index: {}]
  %s2 = inlined_call_operand.hbm [shape: f32[2,8], index: 2, kind: output, shape index: {}]
  %s3 = sld [smem:[#allocation0]]
  $region26: #{tpu_custom_call.1} parent=0
    _
  %s5 = ssub.s32 1, %s3
  %s6 = scalar_select 0, %s5, %s3
  $region1: #{tpu_custom_call.1} parent=0
    #allocation2 [shape = 'u8[8192]{0}', space=vmem, size = 0x2000, scoped, tag = 'input window, operand 0, single buffered']
    #allocation3 [shape = 's32[1]{0}', space=sflag, size = 0x4, scoped, tag = 'scoped memory for tpu_custom_call.1']
    #allocation4 [shape = 's32[1]{0}', space=sflag, size = 0x4, scoped, tag = 'scoped memory for tpu_custom_call.1']
    #allocation5 [shape = 'u8[512]{0}', space=vmem, size = 0x400, scoped, tag = 'input window, operand 1, single buffered']
    #allocation6 [shape = 's32[1]{0}', space=sflag, size = 0x4, scoped, tag = 'scoped memory for tpu_custom_call.1']
    #allocation7 [shape = 'u8[1024]{0}', space=vmem, size = 0x400, scoped, tag = 'output window, operand 0, single buffered']
    %7 = vsyncpa [#allocation3], 0
    %8 = vsyncpa [#allocation6], 0
    %9 = vsyncpa [#allocation4], 0
    // Predicated region
    $region2: #{tpu_custom_call.1} parent=1 // pred_check
      _
    $region3: #{tpu_custom_call.1} parent=1 // pred_check_branch
      %11 = sbr.rel (0) target = $region5
    $region4: #{tpu_custom_call.1} parent=1 // pred_region
      %13 = vsyncadd [#allocation3], 0
      %s14 = sshll.u32 %s0, 4
      %s15 = int_to_ptr.hbm [resolvable:$true] %s14
      %s16 = sshll.u32 [#allocation2], 4
      %s17 = int_to_ptr.vmem [resolvable:$true] %s16
      %22 = dma.hbm_to_vmem [thread:$0]  %s15, 256, %s17, [#allocation3], 128, 128, 8
    $region5: #{tpu_custom_call.1} parent=1 // pred_fallthru
      _
    // Predicated region
    $region6: #{tpu_custom_call.1} parent=1 // pred_check
      _
    $region7: #{tpu_custom_call.1} parent=1 // pred_check_branch
      %24 = sbr.rel (0) target = $region9
    $region8: #{tpu_custom_call.1} parent=1 // pred_region
      %26 = vsyncadd [#allocation6], 0
      %s28 = sshll.u32 %s1, 4
      %s29 = int_to_ptr.hbm [resolvable:$true] %s28
      %s30 = sshll.u32 [#allocation5], 4
      %s31 = int_to_ptr.vmem [resolvable:$true] %s30
      %33 = dma.hbm_to_vmem [thread:$0]  %s29, 16, %s31, [#allocation6]
    $region9: #{tpu_custom_call.1} parent=1 // pred_fallthru
      _
    // Predicated region
    $region10: #{tpu_custom_call.1} parent=1 // pred_check
      _
    $region11: #{tpu_custom_call.1} parent=1 // pred_check_branch
      %35 = sbr.rel (0) target = $region13
    $region12: #{tpu_custom_call.1} parent=1 // pred_region
      %37 = dma.done [#allocation3], 256
    $region13: #{tpu_custom_call.1} parent=1 // pred_fallthru
      _
    // Predicated region
    $region14: #{tpu_custom_call.1} parent=1 // pred_check
      _
    $region15: #{tpu_custom_call.1} parent=1 // pred_check_branch
      %39 = sbr.rel (0) target = $region17
    $region16: #{tpu_custom_call.1} parent=1 // pred_region
      %41 = dma.done [#allocation6], 16
    $region17: #{tpu_custom_call.1} parent=1 // pred_fallthru
      _
    %v42 = vld [vmem:[#allocation2] sm:$0xff]
    %v43 = vld [vmem:[#allocation2 + $0x8] sm:$0xff]
    %v44 = vld [vmem:[#allocation5] sm:$0x1]
    %v46 = vperm.slane %v44, 0
    %v48 = vmul.f32 %v42, %v46
    %v49 = vmul.f32 %v43, %v46
    %vm50 = vcmask 261120
    %v51 = vsel %vm50, %v48, 0.0
    %52 = vadd.xlane.f32.xlu0 %v51
    %v53 = vpop.xlane.xlu0 %52
    %v54 = vsel %vm50, %v49, 0.0
    %55 = vadd.xlane.f32.xlu0 %v54
    %v56 = vpop.xlane.xlu0 %55
    %v59 = vlaneseq
    %v60 = vand.u32 %v59, 127
    %v61 = vperm.slane %v53, %v60
    %v62 = vperm.slane %v56, %v60
    %vm63 = vcmask 1041409
    %v64 = vsel %vm63, %v62, %v61
    %vm66 = vcmask 58368
    %v67 = vsel %vm66, %v64, -inf
    %68 = vmax.xlane.f32.xlu0 %v67
    %v69 = vpop.xlane.xlu0 %68
    %v71 = vperm.slane %v69, 0
    %v72 = vperm.slane %v69, 1
    %v75 = vsub.f32 %v53, %v71
    %v76 = vsub.f32 %v56, %v72
    %v77 = vmul.f32 %v75, 1.442695
    %v78 = vpow.pop %v77
    %v79 = vmul.f32 %v76, 1.442695
    %v80 = vpow.pop %v79
    %83 = vset.pattern.permute.xlu0 0
    %84 = vperm.xlu0 %83, %v78
    %v85 = vpop.permute.xlu0 %84
    %86 = vset.pattern.permute.xlu0 0
    %87 = vperm.xlu0 %86, %v80
    %v88 = vpop.permute.xlu0 %87
    %v89 = vperm.slane %v85, %v60
    %v90 = vperm.slane %v88, %v60
    %v91 = vsel %vm63, %v90, %v89
    %v93 = vsel %vm66, %v91, 0.0
    %94 = vadd.xlane.f32.xlu0 %v93
    %v95 = vpop.xlane.xlu0 %94
    %v96 = vrcp.pop %v95
    %v97 = vmul.f32 %v95, %v96
    %v98 = vsub.f32 1.0, %v97
    %v99 = vmul.f32 %v96, %v98
    %v100 = vadd.f32 %v96, %v99
    %vm101 = vweird.f32 %v95
    %vm102 = vweird.f32 %v96
    %vm103 = vmor %vm101, %vm102
    %v104 = vsel %vm103, %v96, %v100
    %v105 = vand.u32 2147483647, %v95
    %vm106 = vcmp.eq.f32.partialorder %v105, 8.507059e+37
    %v107 = vand.u32 %v95, 2147483648
    %v108 = vor.u32 1.1754944e-38, %v107
    %v109 = vsel %vm106, %v108, %v104
    %v111 = vperm.slane %v109, 0
    %v112 = vperm.slane %v109, 1
    %v115 = vmul.f32 %v78, %v111
    %v116 = vmul.f32 %v80, %v112
    %119 = vset.pattern.permute.xlu0 0
    %120 = vperm.xlu0 %119, %v115
    %v121 = vpop.permute.xlu0 %120
    %122 = vset.pattern.permute.xlu0 0
    %123 = vperm.xlu0 %122, %v116
    %v124 = vpop.permute.xlu0 %123
    %v125 = vperm.slane %v121, %v60
    %v126 = vperm.slane %v124, %v60
    %v127 = vsel %vm63, %v126, %v125
    %129 = vst.msk [vmem:[#allocation7] sm:$0x3] %vm66, %v127
    // Predicated region
    $region18: #{tpu_custom_call.1} parent=1 // pred_check
      _
    $region19: #{tpu_custom_call.1} parent=1 // pred_check_branch
      %131 = sbr.rel (0) target = $region21
    $region20: #{tpu_custom_call.1} parent=1 // pred_region
      %133 = vsyncadd [#allocation4], 0
      %s135 = sshll.u32 [#allocation7], 4
      %s136 = int_to_ptr.vmem [resolvable:$true] %s135
      %s137 = sshll.u32 %s2, 4
      %s138 = int_to_ptr.hbm [resolvable:$true] %s137
      %140 = dma.vmem_to_hbm [thread:$0]  %s136, 32, %s138, [#allocation4]
    $region21: #{tpu_custom_call.1} parent=1 // pred_fallthru
      _
    // Predicated region
    $region22: #{tpu_custom_call.1} parent=1 // pred_check
      _
    $region23: #{tpu_custom_call.1} parent=1 // pred_check_branch
      %142 = sbr.rel (0) target = $region25
    $region24: #{tpu_custom_call.1} parent=1 // pred_region
      %144 = dma.done [#allocation4], 32
    $region25: #{tpu_custom_call.1} parent=1 // pred_fallthru
      _
    %145 = vsyncpa [#allocation3], 1
    %146 = vsyncpa [#allocation6], 1
    %147 = vsyncpa [#allocation4], 1

</llo_original>
